<compile_context>
chip_gen: v7x
topology: tpu7x:2x2x1
jax: 0.10.0
libtpu: 0.0.40
codegen_flags: <defaults>
</compile_context>

<pallas_src>
import numpy as np

import jax
import jax.numpy as jnp
from jax import lax
from jax.experimental import pallas as pl
from jax.experimental.pallas import tpu as pltpu

_NUM_FEATS = 5  # inputs[..., 0..4] = month, day, weekday, hour, minute


def _make_kernel(pack, feat_stride, v_pad, offsets):
    """Tile kernel with all layout constants baked in as Python ints.

    idx_ref   : (TILE_G, pack*feat_stride)  raw time features (float or int)
    table_ref : (pack*v_pad, pack*C)        block-diagonal concat of the 5 tables
    out_ref   : (TILE_G, pack*C)            `pack` tokens per row (lane-dense)
    """

    def kernel(idx_ref, table_ref, out_ref):
        g = out_ref.shape[0]
        idx = idx_ref[...].astype(jnp.int32)            # torch's .to(long), on-chip
        lane_iota = lax.broadcasted_iota(jnp.int32, (g, v_pad), 1)

        # One 128-lane multi-hot window per packed token slot.  The five
        # per-table lane ranges are disjoint, so a boolean OR-reduce is exact.
        windows = []
        for t in range(pack):
            mask = None
            for j in range(_NUM_FEATS):
                col = t * feat_stride + j
                hit = lane_iota == (idx[:, col:col + 1] + offsets[j])
                mask = hit if mask is None else (mask | hit)
            windows.append(mask.astype(jnp.float32))    # (g, v_pad)

        multi_hot = windows[0] if pack == 1 else jnp.concatenate(windows, axis=1)
        # One MXU matmul == gather + sum of the five embeddings for `pack`
        # tokens per output row.
        out_ref[...] = jnp.dot(multi_hot, table_ref[...],
                               preferred_element_type=jnp.float32)

    return kernel


def temporal_embedding(inputs, month_w, day_w, weekday_w, hour_w, minute_w,
                       *, tile_g=None):
    """Pallas equivalent of TemporalEmbedding(n_channels)(inputs).

    inputs : (B, S, F>=5) integer-valued (float accepted; cast like .to(long)).
    *_w    : month(13,C) day(32,C) weekday(7,C) hour(24,C) minute(4,C).
    returns: (B, S, C) float32.
    """
    b, s, f = inputs.shape
    assert f >= _NUM_FEATS, "TemporalEmbedding expects >=5 time-feature columns"

    # Feature column j of `inputs` indexes tables[j] (matches the torch forward).
    tables = [month_w, day_w, weekday_w, hour_w, minute_w]
    sizes = [int(t.shape[0]) for t in tables]
    c = int(month_w.shape[1])
    vocab = sum(sizes)                                     # 80
    v_pad = ((vocab + 127) // 128) * 128                   # lane-aligned K per token slot
    offsets = tuple(int(x) for x in np.concatenate([[0], np.cumsum(sizes[:-1])]))

    # Pack several tokens per output row so stores reach 128 lanes (unmasked
    # vst) and the matmul K dim fills whole MXU tiles; pack=1 is the fallback.
    pack = min(128 // c, 8) if (c <= 128 and 128 % c == 0) else 1

    # Concatenate + pad the tables; for pack>1 lay them out block-diagonally:
    # token slot t maps rows [t*v_pad,(t+1)*v_pad) -> output cols [t*c,(t+1)*c).
    table = jnp.concatenate([t.astype(jnp.float32) for t in tables], axis=0)
    table = jnp.pad(table, ((0, v_pad - vocab), (0, 0)))              # (v_pad, c)
    if pack > 1:
        table = jnp.concatenate(
            [jnp.pad(table, ((0, 0), (t * c, (pack - 1 - t) * c)))
             for t in range(pack)], axis=0)                           # (pack*v_pad, pack*c)

    # Raw inputs go straight into the kernel (cast + offsets happen on-chip);
    # the reshapes below are free row-major metadata changes.
    n = b * s
    n_pad = -(-n // pack) * pack
    idx = inputs.reshape(n, f)
    if n_pad != n:     # rare: pad with index 0 (valid); padded rows sliced off below
        idx = jnp.pad(idx, ((0, n_pad - n), (0, 0)))
    g_total = n_pad // pack
    idx = idx.reshape(g_total, pack * f)

    if tile_g is None:   # keep the live multi-hot around ~4 MiB (v7x-safe tiles)
        tile_g = min(2048, max(256, (4 << 20) // (pack * v_pad * 4)))
    tile_g = min(tile_g, g_total)
    grid = (pl.cdiv(g_total, tile_g),)

    out = pl.pallas_call(
        _make_kernel(pack, f, v_pad, offsets),
        out_shape=jax.ShapeDtypeStruct((g_total, pack * c), jnp.float32),
        grid=grid,
        in_specs=[
            # Token tile: new block each grid step (double-buffered pipeline).
            pl.BlockSpec((tile_g, pack * f), lambda i: (i, 0)),
            # Table: constant block index -> DMA'd once, stays VMEM-resident.
            pl.BlockSpec((pack * v_pad, pack * c), lambda i: (0, 0)),
        ],
        out_specs=pl.BlockSpec((tile_g, pack * c), lambda i: (i, 0)),
        compiler_params=pltpu.CompilerParams(
            dimension_semantics=("parallel",)),   # rows shard across v7x's 2 TCs
    )(idx, table)

    return out.reshape(n_pad, c)[:n].reshape(b, s, c)


def _reference(inputs, month_w, day_w, weekday_w, hour_w, minute_w):
    """Pure-JAX reference matching the PyTorch forward."""
    idx = inputs.astype(jnp.int32)
    return (month_w[idx[..., 0]] + day_w[idx[..., 1]] + weekday_w[idx[..., 2]]
            + hour_w[idx[..., 3]] + minute_w[idx[..., 4]])


def _make_case(key, batch, seq, n_channels):
    sizes = (13, 32, 7, 24, 4)   # month, day, weekday, hour, minute
    keys = jax.random.split(key, 6)
    weights = [jax.random.normal(k, (v, n_channels), jnp.float32)
               for k, v in zip(keys[:5], sizes)]
    maxvals = jnp.asarray(sizes, jnp.int32)
    raw = jax.random.randint(keys[5], (batch, seq, 5), 0, 1 << 16, jnp.int32)
    # Passed as float: the torch module casts with .to(torch.long) itself.
    inputs = (raw % maxvals).astype(jnp.float32)
    return inputs, weights


if __name__ == "__main__":
    key = jax.random.PRNGKey(0)
    k1, k2, k3 = jax.random.split(key, 3)

    # Case 1: small shapes, packed path (C=32 -> 4 tokens per 128-lane row).
    inputs, w = _make_case(k1, 2, 16, 32)
    out = jax.block_until_ready(temporal_embedding(inputs, *w))
    assert out.shape == (2, 16, 32) and out.dtype == jnp.float32
    assert jnp.allclose(out, _reference(inputs, *w), atol=1e-5, rtol=1e-5)

    # Case 2: multi-step grid (small forced tile) exercising the pipeline.
    inputs, w = _make_case(k2, 2, 2048, 32)
    out = jax.block_until_ready(temporal_embedding(inputs, *w, tile_g=256))
    assert out.shape == (2, 2048, 32)
    assert jnp.allclose(out, _reference(inputs, *w), atol=1e-5, rtol=1e-5)

    # Case 3: fallback path (C does not divide 128 -> pack=1, masked stores).
    inputs, w = _make_case(k3, 2, 16, 48)
    out = jax.block_until_ready(temporal_embedding(inputs, *w))
    assert out.shape == (2, 16, 48)
    assert jnp.allclose(out, _reference(inputs, *w), atol=1e-5, rtol=1e-5)

    print("KERNEL_OK")
</pallas_src>

<mosaic_0001>
module attributes {stable_mosaic.version = 11 : i64} {
  func.func @kernel(%arg0: i32, %arg1: memref<8x20xf32, #tpu.memory_space<vmem>>, %arg2: memref<512x128xf32, #tpu.memory_space<vmem>>, %arg3: memref<8x128xf32, #tpu.memory_space<vmem>>) attributes {dimension_semantics = [#tpu.dimension_semantics<parallel>], iteration_bounds = array<i64: 1>, scalar_prefetch = 0 : i64, scratch_operands = 0 : i64, tpu.core_type = #tpu.core_type<tc>, window_params = [{transform_indices = @transform_0, window_bounds = array<i64: 8, 20>}, {pipeline_mode = #tpu.pipeline_mode<synchronous>, transform_indices = @transform_1, window_bounds = array<i64: 512, 128>}, {transform_indices = @transform_2, window_bounds = array<i64: 8, 128>}]} {
    %c0 = arith.constant 0 : index
    %c0_0 = arith.constant 0 : index
    %0 = vector.load %arg1[%c0, %c0_0] : memref<8x20xf32, #tpu.memory_space<vmem>>, vector<8x20xf32>
    %1 = arith.fptosi %0 : vector<8x20xf32> to vector<8x20xi32>
    %2 = tpu.iota {dimensions = array<i32: 1>} : vector<8x128xi32>
    %3 = vector.extract_strided_slice %1 {offsets = [0, 0], sizes = [8, 1], strides = [1, 1]} : vector<8x20xi32> to vector<8x1xi32>
    %c0_i32 = arith.constant 0 : i32
    %4 = vector.broadcast %c0_i32 : i32 to vector<8x1xi32>
    %5 = arith.addi %3, %4 : vector<8x1xi32>
    %6 = vector.broadcast %5 : vector<8x1xi32> to vector<8x128xi32>
    %7 = arith.cmpi eq, %2, %6 : vector<8x128xi32>
    %8 = vector.extract_strided_slice %1 {offsets = [0, 1], sizes = [8, 1], strides = [1, 1]} : vector<8x20xi32> to vector<8x1xi32>
    %c13_i32 = arith.constant 13 : i32
    %9 = vector.broadcast %c13_i32 : i32 to vector<8x1xi32>
    %10 = arith.addi %8, %9 : vector<8x1xi32>
    %11 = vector.broadcast %10 : vector<8x1xi32> to vector<8x128xi32>
    %12 = arith.cmpi eq, %2, %11 : vector<8x128xi32>
    %13 = arith.ori %7, %12 : vector<8x128xi1>
    %14 = vector.extract_strided_slice %1 {offsets = [0, 2], sizes = [8, 1], strides = [1, 1]} : vector<8x20xi32> to vector<8x1xi32>
    %c45_i32 = arith.constant 45 : i32
    %15 = vector.broadcast %c45_i32 : i32 to vector<8x1xi32>
    %16 = arith.addi %14, %15 : vector<8x1xi32>
    %17 = vector.broadcast %16 : vector<8x1xi32> to vector<8x128xi32>
    %18 = arith.cmpi eq, %2, %17 : vector<8x128xi32>
    %19 = arith.ori %13, %18 : vector<8x128xi1>
    %20 = vector.extract_strided_slice %1 {offsets = [0, 3], sizes = [8, 1], strides = [1, 1]} : vector<8x20xi32> to vector<8x1xi32>
    %c52_i32 = arith.constant 52 : i32
    %21 = vector.broadcast %c52_i32 : i32 to vector<8x1xi32>
    %22 = arith.addi %20, %21 : vector<8x1xi32>
    %23 = vector.broadcast %22 : vector<8x1xi32> to vector<8x128xi32>
    %24 = arith.cmpi eq, %2, %23 : vector<8x128xi32>
    %25 = arith.ori %19, %24 : vector<8x128xi1>
    %26 = vector.extract_strided_slice %1 {offsets = [0, 4], sizes = [8, 1], strides = [1, 1]} : vector<8x20xi32> to vector<8x1xi32>
    %c76_i32 = arith.constant 76 : i32
    %27 = vector.broadcast %c76_i32 : i32 to vector<8x1xi32>
    %28 = arith.addi %26, %27 : vector<8x1xi32>
    %29 = vector.broadcast %28 : vector<8x1xi32> to vector<8x128xi32>
    %30 = arith.cmpi eq, %2, %29 : vector<8x128xi32>
    %31 = arith.ori %25, %30 : vector<8x128xi1>
    %32 = arith.extui %31 : vector<8x128xi1> to vector<8x128xi32>
    %33 = arith.sitofp %32 : vector<8x128xi32> to vector<8x128xf32>
    %34 = vector.extract_strided_slice %1 {offsets = [0, 5], sizes = [8, 1], strides = [1, 1]} : vector<8x20xi32> to vector<8x1xi32>
    %c0_i32_1 = arith.constant 0 : i32
    %35 = vector.broadcast %c0_i32_1 : i32 to vector<8x1xi32>
    %36 = arith.addi %34, %35 : vector<8x1xi32>
    %37 = vector.broadcast %36 : vector<8x1xi32> to vector<8x128xi32>
    %38 = arith.cmpi eq, %2, %37 : vector<8x128xi32>
    %39 = vector.extract_strided_slice %1 {offsets = [0, 6], sizes = [8, 1], strides = [1, 1]} : vector<8x20xi32> to vector<8x1xi32>
    %c13_i32_2 = arith.constant 13 : i32
    %40 = vector.broadcast %c13_i32_2 : i32 to vector<8x1xi32>
    %41 = arith.addi %39, %40 : vector<8x1xi32>
    %42 = vector.broadcast %41 : vector<8x1xi32> to vector<8x128xi32>
    %43 = arith.cmpi eq, %2, %42 : vector<8x128xi32>
    %44 = arith.ori %38, %43 : vector<8x128xi1>
    %45 = vector.extract_strided_slice %1 {offsets = [0, 7], sizes = [8, 1], strides = [1, 1]} : vector<8x20xi32> to vector<8x1xi32>
    %c45_i32_3 = arith.constant 45 : i32
    %46 = vector.broadcast %c45_i32_3 : i32 to vector<8x1xi32>
    %47 = arith.addi %45, %46 : vector<8x1xi32>
    %48 = vector.broadcast %47 : vector<8x1xi32> to vector<8x128xi32>
    %49 = arith.cmpi eq, %2, %48 : vector<8x128xi32>
    %50 = arith.ori %44, %49 : vector<8x128xi1>
    %51 = vector.extract_strided_slice %1 {offsets = [0, 8], sizes = [8, 1], strides = [1, 1]} : vector<8x20xi32> to vector<8x1xi32>
    %c52_i32_4 = arith.constant 52 : i32
    %52 = vector.broadcast %c52_i32_4 : i32 to vector<8x1xi32>
    %53 = arith.addi %51, %52 : vector<8x1xi32>
    %54 = vector.broadcast %53 : vector<8x1xi32> to vector<8x128xi32>
    %55 = arith.cmpi eq, %2, %54 : vector<8x128xi32>
    %56 = arith.ori %50, %55 : vector<8x128xi1>
    %57 = vector.extract_strided_slice %1 {offsets = [0, 9], sizes = [8, 1], strides = [1, 1]} : vector<8x20xi32> to vector<8x1xi32>
    %c76_i32_5 = arith.constant 76 : i32
    %58 = vector.broadcast %c76_i32_5 : i32 to vector<8x1xi32>
    %59 = arith.addi %57, %58 : vector<8x1xi32>
    %60 = vector.broadcast %59 : vector<8x1xi32> to vector<8x128xi32>
    %61 = arith.cmpi eq, %2, %60 : vector<8x128xi32>
    %62 = arith.ori %56, %61 : vector<8x128xi1>
    %63 = arith.extui %62 : vector<8x128xi1> to vector<8x128xi32>
    %64 = arith.sitofp %63 : vector<8x128xi32> to vector<8x128xf32>
    %65 = vector.extract_strided_slice %1 {offsets = [0, 10], sizes = [8, 1], strides = [1, 1]} : vector<8x20xi32> to vector<8x1xi32>
    %c0_i32_6 = arith.constant 0 : i32
    %66 = vector.broadcast %c0_i32_6 : i32 to vector<8x1xi32>
    %67 = arith.addi %65, %66 : vector<8x1xi32>
    %68 = vector.broadcast %67 : vector<8x1xi32> to vector<8x128xi32>
    %69 = arith.cmpi eq, %2, %68 : vector<8x128xi32>
    %70 = vector.extract_strided_slice %1 {offsets = [0, 11], sizes = [8, 1], strides = [1, 1]} : vector<8x20xi32> to vector<8x1xi32>
    %c13_i32_7 = arith.constant 13 : i32
    %71 = vector.broadcast %c13_i32_7 : i32 to vector<8x1xi32>
    %72 = arith.addi %70, %71 : vector<8x1xi32>
    %73 = vector.broadcast %72 : vector<8x1xi32> to vector<8x128xi32>
    %74 = arith.cmpi eq, %2, %73 : vector<8x128xi32>
    %75 = arith.ori %69, %74 : vector<8x128xi1>
    %76 = vector.extract_strided_slice %1 {offsets = [0, 12], sizes = [8, 1], strides = [1, 1]} : vector<8x20xi32> to vector<8x1xi32>
    %c45_i32_8 = arith.constant 45 : i32
    %77 = vector.broadcast %c45_i32_8 : i32 to vector<8x1xi32>
    %78 = arith.addi %76, %77 : vector<8x1xi32>
    %79 = vector.broadcast %78 : vector<8x1xi32> to vector<8x128xi32>
    %80 = arith.cmpi eq, %2, %79 : vector<8x128xi32>
    %81 = arith.ori %75, %80 : vector<8x128xi1>
    %82 = vector.extract_strided_slice %1 {offsets = [0, 13], sizes = [8, 1], strides = [1, 1]} : vector<8x20xi32> to vector<8x1xi32>
    %c52_i32_9 = arith.constant 52 : i32
    %83 = vector.broadcast %c52_i32_9 : i32 to vector<8x1xi32>
    %84 = arith.addi %82, %83 : vector<8x1xi32>
    %85 = vector.broadcast %84 : vector<8x1xi32> to vector<8x128xi32>
    %86 = arith.cmpi eq, %2, %85 : vector<8x128xi32>
    %87 = arith.ori %81, %86 : vector<8x128xi1>
    %88 = vector.extract_strided_slice %1 {offsets = [0, 14], sizes = [8, 1], strides = [1, 1]} : vector<8x20xi32> to vector<8x1xi32>
    %c76_i32_10 = arith.constant 76 : i32
    %89 = vector.broadcast %c76_i32_10 : i32 to vector<8x1xi32>
    %90 = arith.addi %88, %89 : vector<8x1xi32>
    %91 = vector.broadcast %90 : vector<8x1xi32> to vector<8x128xi32>
    %92 = arith.cmpi eq, %2, %91 : vector<8x128xi32>
    %93 = arith.ori %87, %92 : vector<8x128xi1>
    %94 = arith.extui %93 : vector<8x128xi1> to vector<8x128xi32>
    %95 = arith.sitofp %94 : vector<8x128xi32> to vector<8x128xf32>
    %96 = vector.extract_strided_slice %1 {offsets = [0, 15], sizes = [8, 1], strides = [1, 1]} : vector<8x20xi32> to vector<8x1xi32>
    %c0_i32_11 = arith.constant 0 : i32
    %97 = vector.broadcast %c0_i32_11 : i32 to vector<8x1xi32>
    %98 = arith.addi %96, %97 : vector<8x1xi32>
    %99 = vector.broadcast %98 : vector<8x1xi32> to vector<8x128xi32>
    %100 = arith.cmpi eq, %2, %99 : vector<8x128xi32>
    %101 = vector.extract_strided_slice %1 {offsets = [0, 16], sizes = [8, 1], strides = [1, 1]} : vector<8x20xi32> to vector<8x1xi32>
    %c13_i32_12 = arith.constant 13 : i32
    %102 = vector.broadcast %c13_i32_12 : i32 to vector<8x1xi32>
    %103 = arith.addi %101, %102 : vector<8x1xi32>
    %104 = vector.broadcast %103 : vector<8x1xi32> to vector<8x128xi32>
    %105 = arith.cmpi eq, %2, %104 : vector<8x128xi32>
    %106 = arith.ori %100, %105 : vector<8x128xi1>
    %107 = vector.extract_strided_slice %1 {offsets = [0, 17], sizes = [8, 1], strides = [1, 1]} : vector<8x20xi32> to vector<8x1xi32>
    %c45_i32_13 = arith.constant 45 : i32
    %108 = vector.broadcast %c45_i32_13 : i32 to vector<8x1xi32>
    %109 = arith.addi %107, %108 : vector<8x1xi32>
    %110 = vector.broadcast %109 : vector<8x1xi32> to vector<8x128xi32>
    %111 = arith.cmpi eq, %2, %110 : vector<8x128xi32>
    %112 = arith.ori %106, %111 : vector<8x128xi1>
    %113 = vector.extract_strided_slice %1 {offsets = [0, 18], sizes = [8, 1], strides = [1, 1]} : vector<8x20xi32> to vector<8x1xi32>
    %c52_i32_14 = arith.constant 52 : i32
    %114 = vector.broadcast %c52_i32_14 : i32 to vector<8x1xi32>
    %115 = arith.addi %113, %114 : vector<8x1xi32>
    %116 = vector.broadcast %115 : vector<8x1xi32> to vector<8x128xi32>
    %117 = arith.cmpi eq, %2, %116 : vector<8x128xi32>
    %118 = arith.ori %112, %117 : vector<8x128xi1>
    %119 = vector.extract_strided_slice %1 {offsets = [0, 19], sizes = [8, 1], strides = [1, 1]} : vector<8x20xi32> to vector<8x1xi32>
    %c76_i32_15 = arith.constant 76 : i32
    %120 = vector.broadcast %c76_i32_15 : i32 to vector<8x1xi32>
    %121 = arith.addi %119, %120 : vector<8x1xi32>
    %122 = vector.broadcast %121 : vector<8x1xi32> to vector<8x128xi32>
    %123 = arith.cmpi eq, %2, %122 : vector<8x128xi32>
    %124 = arith.ori %118, %123 : vector<8x128xi1>
    %125 = arith.extui %124 : vector<8x128xi1> to vector<8x128xi32>
    %126 = arith.sitofp %125 : vector<8x128xi32> to vector<8x128xf32>
    %127 = tpu.concatenate %33, %64, %95, %126 in 1 : vector<8x128xf32>, vector<8x128xf32>, vector<8x128xf32>, vector<8x128xf32> -> vector<8x512xf32>
    %c0_16 = arith.constant 0 : index
    %c0_17 = arith.constant 0 : index
    %128 = vector.load %arg2[%c0_16, %c0_17] : memref<512x128xf32, #tpu.memory_space<vmem>>, vector<512x128xf32>
    %cst = arith.constant dense<0.000000e+00> : vector<8x128xf32>
    %129 = tpu.matmul %127, %128, %cst {dimension_numbers = #tpu.dot_dimension_numbers<[1], [0], [0], [1], [0, 0, 1, 1], [], []>} : vector<8x512xf32>, vector<512x128xf32>, vector<8x128xf32> -> vector<8x128xf32>
    %c0_18 = arith.constant 0 : index
    %c0_19 = arith.constant 0 : index
    %130 = vector.load %arg3[%c0_18, %c0_19] : memref<8x128xf32, #tpu.memory_space<vmem>>, vector<8x128xf32>
    tpu.vector_store %arg3[%c0_18, %c0_19], %129 {strides = array<i32>} : memref<8x128xf32, #tpu.memory_space<vmem>>, vector<8x128xf32>,
    return
  }
  func.func @transform_0(%arg0: i32) -> (i32, i32) {
    %c0_i32 = arith.constant 0 : i32
    %c0_i32_0 = arith.constant 0 : i32
    return %arg0, %c0_i32 : i32, i32
  }
  func.func @transform_1(%arg0: i32) -> (i32, i32) {
    %c0_i32 = arith.constant 0 : i32
    %c0_i32_0 = arith.constant 0 : i32
    %c0_i32_1 = arith.constant 0 : i32
    return %c0_i32, %c0_i32_0 : i32, i32
  }
  func.func @transform_2(%arg0: i32) -> (i32, i32) {
    %c0_i32 = arith.constant 0 : i32
    %c0_i32_0 = arith.constant 0 : i32
    return %arg0, %c0_i32 : i32, i32
  }
}

</mosaic_0001>

<llo_original>
// kernel: tpu_custom_call.1
$region0: #{tpu_custom_call.1}
  #allocation0 [shape = 'u32[]', space=smem, size = 0x4, offset = 0x4, fixed_abs, tag = 'smem constant byte address 0x4 - core index']
  #allocation1 [shape = 'u32[144,128]{1,0:T(1,128)}', space=vmem, size = 0x12000, scoped, tag = 'internal scratch']
  %s0 = inlined_call_operand.hbm [shape: f32[8,20], index: 0, kind: input, shape index: {}]
  %s1 = inlined_call_operand.hbm [shape: f32[512,128], index: 1, kind: input, shape index: {}]
  %s2 = inlined_call_operand.hbm [shape: f32[8,128], index: 2, kind: output, shape index: {}]
  %s3 = sld [smem:[#allocation0]]
  $region26: #{tpu_custom_call.1} parent=0
    _
  %s5 = ssub.s32 1, %s3
  %s6 = scalar_select 0, %s5, %s3
  $region1: #{tpu_custom_call.1} parent=0
    #allocation2 [shape = 'u8[4096]{0}', space=vmem, size = 0x1000, scoped, tag = 'input window, operand 0, single buffered']
    #allocation3 [shape = 's32[1]{0}', space=sflag, size = 0x4, scoped, tag = 'scoped memory for tpu_custom_call.1']
    #allocation4 [shape = 's32[1]{0}', space=sflag, size = 0x4, scoped, tag = 'scoped memory for tpu_custom_call.1']
    #allocation5 [shape = 'u8[262144]{0}', space=vmem, size = 0x40000, scoped, tag = 'input window, operand 1, single buffered']
    #allocation6 [shape = 's32[1]{0}', space=sflag, size = 0x4, scoped, tag = 'scoped memory for tpu_custom_call.1']
    #allocation7 [shape = 'u8[4096]{0}', space=vmem, size = 0x1000, scoped, tag = 'output window, operand 0, single buffered']
    %7 = vsyncpa [#allocation3], 0
    %8 = vsyncpa [#allocation6], 0
    %9 = vsyncpa [#allocation4], 0
    // Predicated region
    $region2: #{tpu_custom_call.1} parent=1 // pred_check
      _
    $region3: #{tpu_custom_call.1} parent=1 // pred_check_branch
      %11 = sbr.rel (0) target = $region5
    $region4: #{tpu_custom_call.1} parent=1 // pred_region
      %s13 = ssub.s32 128, 128
      %14 = vsyncadd [#allocation3], %s13
      %s16 = sshll.u32 [#allocation2], 4
      %s17 = int_to_ptr.vmem [resolvable:$true] %s16
      %19 = dma.hbm_to_vmem [thread:$0]  %s0, 128, %s17, [#allocation3]
    $region5: #{tpu_custom_call.1} parent=1 // pred_fallthru
      _
    // Predicated region
    $region6: #{tpu_custom_call.1} parent=1 // pred_check
      _
    $region7: #{tpu_custom_call.1} parent=1 // pred_check_branch
      %21 = sbr.rel (0) target = $region9
    $region8: #{tpu_custom_call.1} parent=1 // pred_region
      %s23 = ssub.s32 8192, 8192
      %24 = vsyncadd [#allocation6], %s23
      %s25 = sshll.u32 [#allocation5], 4
      %s26 = int_to_ptr.vmem [resolvable:$true] %s25
      %31 = dma.hbm_to_vmem [thread:$0]  %s1, 8192, %s26, [#allocation6], 128, 128, 8
    $region9: #{tpu_custom_call.1} parent=1 // pred_fallthru
      _
    // Predicated region
    $region10: #{tpu_custom_call.1} parent=1 // pred_check
      _
    $region11: #{tpu_custom_call.1} parent=1 // pred_check_branch
      %33 = sbr.rel (0) target = $region13
    $region12: #{tpu_custom_call.1} parent=1 // pred_region
      %34 = dma.done [#allocation3], 128
    $region13: #{tpu_custom_call.1} parent=1 // pred_fallthru
      _
    // Predicated region
    $region14: #{tpu_custom_call.1} parent=1 // pred_check
      _
    $region15: #{tpu_custom_call.1} parent=1 // pred_check_branch
      %36 = sbr.rel (0) target = $region17
    $region16: #{tpu_custom_call.1} parent=1 // pred_region
      %37 = dma.done [#allocation6], 8192
    $region17: #{tpu_custom_call.1} parent=1 // pred_fallthru
      _
    %v38 = vld [vmem:[#allocation2] sm:$0xff]
    %v39 = vcvt.f32.s32.to.zero.pseudo %v38
    %v40 = vlaneseq
    %v41 = vand.u32 %v40, 127
    %42 = vset.pattern.permute.xlu0 0
    %43 = vperm.xlu0 %42, %v39
    %v44 = vpop.permute.xlu0 %43
    %vm45 = vcmp.eq.s32.totalorder %v41, %v44
    %v46 = vadd.s32 %v39, 13
    %47 = vset.pattern.permute.xlu0 1
    %48 = vperm.xlu0 %47, %v46
    %v49 = vpop.permute.xlu0 %48
    %vm50 = vcmp.eq.s32.totalorder %v41, %v49
    %vm51 = vmor %vm45, %vm50
    %v52 = vadd.s32 %v39, 45
    %53 = vset.pattern.permute.xlu0 2
    %54 = vperm.xlu0 %53, %v52
    %v55 = vpop.permute.xlu0 %54
    %vm56 = vcmp.eq.s32.totalorder %v41, %v55
    %vm57 = vmor %vm51, %vm56
    %v58 = vadd.s32 %v39, 52
    %59 = vset.pattern.permute.xlu0 3
    %60 = vperm.xlu0 %59, %v58
    %v61 = vpop.permute.xlu0 %60
    %vm62 = vcmp.eq.s32.totalorder %v41, %v61
    %vm63 = vmor %vm57, %vm62
    %v64 = vadd.s32 %v39, 76
    %65 = vset.pattern.permute.xlu0 4
    %66 = vperm.xlu0 %65, %v64
    %v67 = vpop.permute.xlu0 %66
    %vm68 = vcmp.eq.s32.totalorder %v41, %v67
    %vm69 = vmor %vm63, %vm68
    %v70 = vsel %vm69, 1, 0
    %v71 = vcvt.s32.f32 %v70
    %72 = vset.pattern.permute.xlu0 5
    %73 = vperm.xlu0 %72, %v39
    %v74 = vpop.permute.xlu0 %73
    %vm75 = vcmp.eq.s32.totalorder %v41, %v74
    %76 = vset.pattern.permute.xlu0 6
    %77 = vperm.xlu0 %76, %v46
    %v78 = vpop.permute.xlu0 %77
    %vm79 = vcmp.eq.s32.totalorder %v41, %v78
    %vm80 = vmor %vm75, %vm79
    %81 = vset.pattern.permute.xlu0 7
    %82 = vperm.xlu0 %81, %v52
    %v83 = vpop.permute.xlu0 %82
    %vm84 = vcmp.eq.s32.totalorder %v41, %v83
    %vm85 = vmor %vm80, %vm84
    %86 = vset.pattern.permute.xlu0 8
    %87 = vperm.xlu0 %86, %v58
    %v88 = vpop.permute.xlu0 %87
    %vm89 = vcmp.eq.s32.totalorder %v41, %v88
    %vm90 = vmor %vm85, %vm89
    %91 = vset.pattern.permute.xlu0 9
    %92 = vperm.xlu0 %91, %v64
    %v93 = vpop.permute.xlu0 %92
    %vm94 = vcmp.eq.s32.totalorder %v41, %v93
    %vm95 = vmor %vm90, %vm94
    %v96 = vsel %vm95, 1, 0
    %v97 = vcvt.s32.f32 %v96
    %98 = vset.pattern.permute.xlu0 10
    %99 = vperm.xlu0 %98, %v39
    %v100 = vpop.permute.xlu0 %99
    %vm101 = vcmp.eq.s32.totalorder %v41, %v100
    %102 = vset.pattern.permute.xlu0 11
    %103 = vperm.xlu0 %102, %v46
    %v104 = vpop.permute.xlu0 %103
    %vm105 = vcmp.eq.s32.totalorder %v41, %v104
    %vm106 = vmor %vm101, %vm105
    %107 = vset.pattern.permute.xlu0 12
    %108 = vperm.xlu0 %107, %v52
    %v109 = vpop.permute.xlu0 %108
    %vm110 = vcmp.eq.s32.totalorder %v41, %v109
    %vm111 = vmor %vm106, %vm110
    %112 = vset.pattern.permute.xlu0 13
    %113 = vperm.xlu0 %112, %v58
    %v114 = vpop.permute.xlu0 %113
    %vm115 = vcmp.eq.s32.totalorder %v41, %v114
    %vm116 = vmor %vm111, %vm115
    %117 = vset.pattern.permute.xlu0 14
    %118 = vperm.xlu0 %117, %v64
    %v119 = vpop.permute.xlu0 %118
    %vm120 = vcmp.eq.s32.totalorder %v41, %v119
    %vm121 = vmor %vm116, %vm120
    %v122 = vsel %vm121, 1, 0
    %v123 = vcvt.s32.f32 %v122
    %124 = vset.pattern.permute.xlu0 15
    %125 = vperm.xlu0 %124, %v39
    %v126 = vpop.permute.xlu0 %125
    %vm127 = vcmp.eq.s32.totalorder %v41, %v126
    %128 = vset.pattern.permute.xlu0 16
    %129 = vperm.xlu0 %128, %v46
    %v130 = vpop.permute.xlu0 %129
    %vm131 = vcmp.eq.s32.totalorder %v41, %v130
    %vm132 = vmor %vm127, %vm131
    %133 = vset.pattern.permute.xlu0 17
    %134 = vperm.xlu0 %133, %v52
    %v135 = vpop.permute.xlu0 %134
    %vm136 = vcmp.eq.s32.totalorder %v41, %v135
    %vm137 = vmor %vm132, %vm136
    %138 = vset.pattern.permute.xlu0 18
    %139 = vperm.xlu0 %138, %v58
    %v140 = vpop.permute.xlu0 %139
    %vm141 = vcmp.eq.s32.totalorder %v41, %v140
    %vm142 = vmor %vm137, %vm141
    %143 = vset.pattern.permute.xlu0 19
    %144 = vperm.xlu0 %143, %v64
    %v145 = vpop.permute.xlu0 %144
    %vm146 = vcmp.eq.s32.totalorder %v41, %v145
    %vm147 = vmor %vm142, %vm146
    %v148 = vsel %vm147, 1, 0
    %v149 = vcvt.s32.f32 %v148
    %v150 = vld [vmem:[#allocation5] sm:$0xff]
    %v151 = vld [vmem:[#allocation5 + $0x8] sm:$0xff]
    %v152 = vld [vmem:[#allocation5 + $0x10] sm:$0xff]
    %v153 = vld [vmem:[#allocation5 + $0x18] sm:$0xff]
    %v154 = vld [vmem:[#allocation5 + $0x20] sm:$0xff]
    %v155 = vld [vmem:[#allocation5 + $0x28] sm:$0xff]
    %v156 = vld [vmem:[#allocation5 + $0x30] sm:$0xff]
    %v157 = vld [vmem:[#allocation5 + $0x38] sm:$0xff]
    %v158 = vld [vmem:[#allocation5 + $0x40] sm:$0xff]
    %v159 = vld [vmem:[#allocation5 + $0x48] sm:$0xff]
    %v160 = vld [vmem:[#allocation5 + $0x50] sm:$0xff]
    %v161 = vld [vmem:[#allocation5 + $0x58] sm:$0xff]
    %v162 = vld [vmem:[#allocation5 + $0x60] sm:$0xff]
    %v163 = vld [vmem:[#allocation5 + $0x68] sm:$0xff]
    %v164 = vld [vmem:[#allocation5 + $0x70] sm:$0xff]
    %v165 = vld [vmem:[#allocation5 + $0x78] sm:$0xff]
    %v166 = vld [vmem:[#allocation5 + $0x80] sm:$0xff]
    %v167 = vld [vmem:[#allocation5 + $0x88] sm:$0xff]
    %v168 = vld [vmem:[#allocation5 + $0x90] sm:$0xff]
    %v169 = vld [vmem:[#allocation5 + $0x98] sm:$0xff]
    %v170 = vld [vmem:[#allocation5 + $0xa0] sm:$0xff]
    %v171 = vld [vmem:[#allocation5 + $0xa8] sm:$0xff]
    %v172 = vld [vmem:[#allocation5 + $0xb0] sm:$0xff]
    %v173 = vld [vmem:[#allocation5 + $0xb8] sm:$0xff]
    %v174 = vld [vmem:[#allocation5 + $0xc0] sm:$0xff]
    %v175 = vld [vmem:[#allocation5 + $0xc8] sm:$0xff]
    %v176 = vld [vmem:[#allocation5 + $0xd0] sm:$0xff]
    %v177 = vld [vmem:[#allocation5 + $0xd8] sm:$0xff]
    %v178 = vld [vmem:[#allocation5 + $0xe0] sm:$0xff]
    %v179 = vld [vmem:[#allocation5 + $0xe8] sm:$0xff]
    %v180 = vld [vmem:[#allocation5 + $0xf0] sm:$0xff]
    %v181 = vld [vmem:[#allocation5 + $0xf8] sm:$0xff]
    %v182 = vld [vmem:[#allocation5 + $0x100] sm:$0xff]
    %v183 = vld [vmem:[#allocation5 + $0x108] sm:$0xff]
    %v184 = vld [vmem:[#allocation5 + $0x110] sm:$0xff]
    %v185 = vld [vmem:[#allocation5 + $0x118] sm:$0xff]
    %v186 = vld [vmem:[#allocation5 + $0x120] sm:$0xff]
    %v187 = vld [vmem:[#allocation5 + $0x128] sm:$0xff]
    %v188 = vld [vmem:[#allocation5 + $0x130] sm:$0xff]
    %v189 = vld [vmem:[#allocation5 + $0x138] sm:$0xff]
    %v190 = vld [vmem:[#allocation5 + $0x140] sm:$0xff]
    %v191 = vld [vmem:[#allocation5 + $0x148] sm:$0xff]
    %v192 = vld [vmem:[#allocation5 + $0x150] sm:$0xff]
    %v193 = vld [vmem:[#allocation5 + $0x158] sm:$0xff]
    %v194 = vld [vmem:[#allocation5 + $0x160] sm:$0xff]
    %v195 = vld [vmem:[#allocation5 + $0x168] sm:$0xff]
    %v196 = vld [vmem:[#allocation5 + $0x170] sm:$0xff]
    %v197 = vld [vmem:[#allocation5 + $0x178] sm:$0xff]
    %v198 = vld [vmem:[#allocation5 + $0x180] sm:$0xff]
    %v199 = vld [vmem:[#allocation5 + $0x188] sm:$0xff]
    %v200 = vld [vmem:[#allocation5 + $0x190] sm:$0xff]
    %v201 = vld [vmem:[#allocation5 + $0x198] sm:$0xff]
    %v202 = vld [vmem:[#allocation5 + $0x1a0] sm:$0xff]
    %v203 = vld [vmem:[#allocation5 + $0x1a8] sm:$0xff]
    %v204 = vld [vmem:[#allocation5 + $0x1b0] sm:$0xff]
    %v205 = vld [vmem:[#allocation5 + $0x1b8] sm:$0xff]
    %v206 = vld [vmem:[#allocation5 + $0x1c0] sm:$0xff]
    %v207 = vld [vmem:[#allocation5 + $0x1c8] sm:$0xff]
    %v208 = vld [vmem:[#allocation5 + $0x1d0] sm:$0xff]
    %v209 = vld [vmem:[#allocation5 + $0x1d8] sm:$0xff]
    %v210 = vld [vmem:[#allocation5 + $0x1e0] sm:$0xff]
    %v211 = vld [vmem:[#allocation5 + $0x1e8] sm:$0xff]
    %v212 = vld [vmem:[#allocation5 + $0x1f0] sm:$0xff]
    %v213 = vld [vmem:[#allocation5 + $0x1f8] sm:$0xff]
    %214 = vmatprep.subr.mxu0 0.0
    %215 = vmatpush1.msra.mxu0 %v150
    %216 = vmatprep.subr.mxu0 0.0
    %217 = vmatpush1.msra.mxu0 %v151
    %218 = vmatprep.subr.mxu0 0.0
    %219 = vmatpush1.msra.mxu0 %v152
    %220 = vmatprep.subr.mxu0 0.0
    %221 = vmatpush1.msra.mxu0 %v153
    %222 = vmatprep.subr.mxu0 0.0
    %223 = vmatpush1.msra.mxu0 %v154
    %224 = vmatprep.subr.mxu0 0.0
    %225 = vmatpush1.msra.mxu0 %v155
    %226 = vmatprep.subr.mxu0 0.0
    %227 = vmatpush1.msra.mxu0 %v156
    %228 = vmatprep.subr.mxu0 0.0
    %229 = vmatpush1.msra.mxu0 %v157
    %230 = vmatprep.subr.mxu0 0.0
    %231 = vmatpush1.msra.mxu0 %v158
    %232 = vmatprep.subr.mxu0 0.0
    %233 = vmatpush1.msra.mxu0 %v159
    %234 = vmatprep.subr.mxu0 0.0
    %235 = vmatpush1.msra.mxu0 %v160
    %236 = vmatprep.subr.mxu0 0.0
    %237 = vmatpush1.msra.mxu0 %v161
    %238 = vmatprep.subr.mxu0 0.0
    %239 = vmatpush1.msra.mxu0 %v162
    %240 = vmatprep.subr.mxu0 0.0
    %241 = vmatpush1.msra.mxu0 %v163
    %242 = vmatprep.subr.mxu0 0.0
    %243 = vmatpush1.msra.mxu0 %v164
    %244 = vmatprep.subr.mxu0 0.0
    %245 = vmatpush1.msra.mxu0 %v165
    %246 = vmatprep.subr.mxu0 0.0
    %247 = vmatpush1.msra.mxu0 %v166
    %248 = vmatprep.subr.mxu0 0.0
    %249 = vmatpush1.msra.mxu0 %v167
    %250 = vmatprep.subr.mxu0 0.0
    %251 = vmatpush1.msra.mxu0 %v168
    %252 = vmatprep.subr.mxu0 0.0
    %253 = vmatpush1.msra.mxu0 %v169
    %254 = vmatprep.subr.mxu0 0.0
    %255 = vmatpush1.msra.mxu0 %v170
    %256 = vmatprep.subr.mxu0 0.0
    %257 = vmatpush1.msra.mxu0 %v171
    %258 = vmatprep.subr.mxu0 0.0
    %259 = vmatpush1.msra.mxu0 %v172
    %260 = vmatprep.subr.mxu0 0.0
    %261 = vmatpush1.msra.mxu0 %v173
    %262 = vmatprep.subr.mxu0 0.0
    %263 = vmatpush1.msra.mxu0 %v174
    %264 = vmatprep.subr.mxu0 0.0
    %265 = vmatpush1.msra.mxu0 %v175
    %266 = vmatprep.subr.mxu0 0.0
    %267 = vmatpush1.msra.mxu0 %v176
    %268 = vmatprep.subr.mxu0 0.0
    %269 = vmatpush1.msra.mxu0 %v177
    %270 = vmatprep.subr.mxu0 0.0
    %271 = vmatpush1.msra.mxu0 %v178
    %272 = vmatprep.subr.mxu0 0.0
    %273 = vmatpush1.msra.mxu0 %v179
    %274 = vmatprep.subr.mxu0 0.0
    %275 = vmatpush1.msra.mxu0 %v180
    %276 = vmatprep.subr.mxu0 0.0
    %277 = vmatpush1.msra.mxu0 %v181
    %278 = vmatprep.mubr.f32.mxu0 %v97
    %279 = vmatmul.mubr.f32.gmra.mrb[0].mxu0 %v71
    %v280 = vpop.f32.mrb[0].mxu0
    %v281 = vadd.f32 0.0, %v280
    %v282 = vpop.f32.mrb[0].mxu0
    %283 = vdwg.mxu0
    %284 = vmatprep.subr.mxu0 0.0
    %285 = vmatpush1.msra.mxu0 %v182
    %286 = vmatprep.subr.mxu0 0.0
    %287 = vmatpush1.msra.mxu0 %v183
    %288 = vmatprep.subr.mxu0 0.0
    %289 = vmatpush1.msra.mxu0 %v184
    %290 = vmatprep.subr.mxu0 0.0
    %291 = vmatpush1.msra.mxu0 %v185
    %292 = vmatprep.subr.mxu0 0.0
    %293 = vmatpush1.msra.mxu0 %v186
    %294 = vmatprep.subr.mxu0 0.0
    %295 = vmatpush1.msra.mxu0 %v187
    %296 = vmatprep.subr.mxu0 0.0
    %297 = vmatpush1.msra.mxu0 %v188
    %298 = vmatprep.subr.mxu0 0.0
    %299 = vmatpush1.msra.mxu0 %v189
    %300 = vmatprep.subr.mxu0 0.0
    %301 = vmatpush1.msra.mxu0 %v190
    %302 = vmatprep.subr.mxu0 0.0
    %303 = vmatpush1.msra.mxu0 %v191
    %304 = vmatprep.subr.mxu0 0.0
    %305 = vmatpush1.msra.mxu0 %v192
    %306 = vmatprep.subr.mxu0 0.0
    %307 = vmatpush1.msra.mxu0 %v193
    %308 = vmatprep.subr.mxu0 0.0
    %309 = vmatpush1.msra.mxu0 %v194
    %310 = vmatprep.subr.mxu0 0.0
    %311 = vmatpush1.msra.mxu0 %v195
    %312 = vmatprep.subr.mxu0 0.0
    %313 = vmatpush1.msra.mxu0 %v196
    %314 = vmatprep.subr.mxu0 0.0
    %315 = vmatpush1.msra.mxu0 %v197
    %316 = vmatprep.subr.mxu0 0.0
    %317 = vmatpush1.msra.mxu0 %v198
    %318 = vmatprep.subr.mxu0 0.0
    %319 = vmatpush1.msra.mxu0 %v199
    %320 = vmatprep.subr.mxu0 0.0
    %321 = vmatpush1.msra.mxu0 %v200
    %322 = vmatprep.subr.mxu0 0.0
    %323 = vmatpush1.msra.mxu0 %v201
    %324 = vmatprep.subr.mxu0 0.0
    %325 = vmatpush1.msra.mxu0 %v202
    %326 = vmatprep.subr.mxu0 0.0
    %327 = vmatpush1.msra.mxu0 %v203
    %328 = vmatprep.subr.mxu0 0.0
    %329 = vmatpush1.msra.mxu0 %v204
    %330 = vmatprep.subr.mxu0 0.0
    %331 = vmatpush1.msra.mxu0 %v205
    %332 = vmatprep.subr.mxu0 0.0
    %333 = vmatpush1.msra.mxu0 %v206
    %334 = vmatprep.subr.mxu0 0.0
    %335 = vmatpush1.msra.mxu0 %v207
    %336 = vmatprep.subr.mxu0 0.0
    %337 = vmatpush1.msra.mxu0 %v208
    %338 = vmatprep.subr.mxu0 0.0
    %339 = vmatpush1.msra.mxu0 %v209
    %340 = vmatprep.subr.mxu0 0.0
    %341 = vmatpush1.msra.mxu0 %v210
    %342 = vmatprep.subr.mxu0 0.0
    %343 = vmatpush1.msra.mxu0 %v211
    %344 = vmatprep.subr.mxu0 0.0
    %345 = vmatpush1.msra.mxu0 %v212
    %346 = vmatprep.subr.mxu0 0.0
    %347 = vmatpush1.msra.mxu0 %v213
    %348 = vmatprep.mubr.f32.mxu0 %v149
    %349 = vmatmul.mubr.f32.gmra.mrb[0].mxu0 %v123
    %v350 = vpop.f32.mrb[0].mxu0
    %v351 = vadd.f32 %v281, %v350
    %v352 = vpop.f32.mrb[0].mxu0
    %353 = vdwg.mxu0
    %354 = vst [vmem:[#allocation7] sm:$0xff] %v351
    // Predicated region
    $region18: #{tpu_custom_call.1} parent=1 // pred_check
      _
    $region19: #{tpu_custom_call.1} parent=1 // pred_check_branch
      %356 = sbr.rel (0) target = $region21
    $region20: #{tpu_custom_call.1} parent=1 // pred_region
      %s358 = ssub.s32 128, 128
      %359 = vsyncadd [#allocation4], %s358
      %s361 = sshll.u32 [#allocation7], 4
      %s362 = int_to_ptr.vmem [resolvable:$true] %s361
      %364 = dma.vmem_to_hbm [thread:$0]  %s362, 128, %s2, [#allocation4]
    $region21: #{tpu_custom_call.1} parent=1 // pred_fallthru
      _
    // Predicated region
    $region22: #{tpu_custom_call.1} parent=1 // pred_check
      _
    $region23: #{tpu_custom_call.1} parent=1 // pred_check_branch
      %366 = sbr.rel (0) target = $region25
    $region24: #{tpu_custom_call.1} parent=1 // pred_region
      %367 = dma.done [#allocation4], 128
    $region25: #{tpu_custom_call.1} parent=1 // pred_fallthru
      _
    %368 = vsyncpa [#allocation3], 1
    %369 = vsyncpa [#allocation6], 1
    %370 = vsyncpa [#allocation4], 1

</llo_original>
